<compile_context>
chip_gen: v7x
topology: tpu7x:2x2x1
jax: 0.10.0
libtpu: 0.0.40
codegen_flags: <defaults>
</compile_context>

<pallas_src>
import math
import functools

import jax
import jax.numpy as jnp
from jax.experimental import pallas as pl
from jax.experimental.pallas import tpu as pltpu


# ---------------------------------------------------------------------------
# Kernel
# ---------------------------------------------------------------------------
def _arcfc_kernel(x_ref, wt_ref, label_ref, o_ref, *, s, cos_m, sin_m, th, mm,
                  easy_margin):
    eps = 1e-12  # torch.nn.functional.normalize default eps
    j = pl.program_id(0)

    # --- F.normalize(x, p=2, dim=1): x * rsqrt(max(||x||^2, eps^2)) --------
    # B*D work, negligible; rsqrt goes to the EUP slot.
    x = x_ref[...].astype(jnp.float32)                          # (B, D)
    inv_x = jax.lax.rsqrt(
        jnp.maximum(jnp.sum(x * x, axis=1, keepdims=True), eps * eps))
    xn = x * inv_x                                              # (B, D) f32

    # --- weight tile, stored transposed: (D, TN), stream dtype -------------
    wt = wt_ref[...]                                            # (D, TN)
    D = wt.shape[0]

    # Per-column ||w||^2 on the MXU (it is nearly idle at small B):
    #   ones(1, D) @ (wt*wt) -> (1, TN), already in the orientation needed to
    #   scale cosine's columns -- no XLU lane reduction, no transpose.
    wsq = wt * wt                                               # (D, TN)
    ones_row = jnp.ones((1, D), dtype=wt.dtype)
    w_norm_sq = jax.lax.dot_general(
        ones_row, wsq,
        dimension_numbers=(((1,), (0,)), ((), ())),
        preferred_element_type=jnp.float32)                     # (1, TN)
    inv_w = jax.lax.rsqrt(jnp.maximum(w_norm_sq, eps * eps))    # (1, TN)

    # cosine = (xn @ wt) * inv_w : plain (B,D)x(D,TN) matmul, f32 accumulate,
    # weight-row normalization folded into a (B, TN) post-scale.
    raw = jax.lax.dot_general(
        xn.astype(wt.dtype), wt,
        dimension_numbers=(((1,), (0,)), ((), ())),
        preferred_element_type=jnp.float32)                     # (B, TN)
    cosine = raw * inv_w

    # Clamp to avoid NaN when |cosine| exceeds 1 by rounding.
    sine = jnp.sqrt(jnp.maximum(1.0 - cosine * cosine, 0.0))
    phi = cosine * cos_m - sine * sin_m
    if easy_margin:
        phi = jnp.where(cosine > 0.0, phi, cosine)
    else:
        phi = jnp.where(cosine > th, phi, cosine - mm)

    # one_hot scatter == compare against the GLOBAL column index.
    B, TN = o_ref.shape
    col = j * TN + jax.lax.broadcasted_iota(jnp.int32, (B, TN), 1)
    labels = label_ref[...]                                     # (B, 1) int32
    o_ref[...] = (jnp.where(col == labels, phi, cosine) * s).astype(o_ref.dtype)


# ---------------------------------------------------------------------------
# Tiling helpers
# ---------------------------------------------------------------------------
def _round_up(v, k):
    return ((v + k - 1) // k) * k


def _vmem_capacity_bytes():
    """Physical VMEM per TensorCore; conservative 64 MiB fallback (v7x-safe)."""
    try:
        info = pltpu.get_tpu_info()
        cap = getattr(info, "vmem_capacity_bytes", None)
        if cap:
            return int(cap)
    except Exception:
        pass
    return 64 * 1024 * 1024


def _auto_tile_n(B, D, N, w_itemsize, budget):
    """Largest TN (multiple of 128) fitting `budget`, capped so the grid keeps
    several tiles (DMA overlap + 2 tiles per v7x TensorCore)."""
    Bp = _round_up(B, 8)
    Dp = max(_round_up(D, 128), 128)
    # Per output-column VMEM: W tile (double-buffered) + wt*wt temporary
    # + output tile (double-buffered) + a handful of (B, TN) f32 temporaries.
    per_col = 3 * Dp * w_itemsize + 2 * Bp * 4 + 6 * Bp * 4
    resident = 4 * Bp * Dp * 4 + 2 * Bp * 128 * 4     # x, xn, temps, label
    avail = max(budget - resident, 1 << 20)
    tn = max((avail // per_col) // 128 * 128, 128)
    # Avoid grid=(1,) (no prefetch/writeback overlap) unless N is tiny, and
    # keep >= 4 tiles on larger N so both v7x cores stay busy.
    if N >= 4 * 128:
        tn = min(tn, _round_up(-(-N // 4), 128))
    elif N >= 2 * 128:
        tn = min(tn, _round_up(-(-N // 2), 128))
    if tn >= N:
        return N
    return int(tn)


# ---------------------------------------------------------------------------
# Wrapper
# ---------------------------------------------------------------------------
def arcfc_forward(x, weight, label, *, s=30.0, m=0.5, easy_margin=False,
                  tile_n=None, w_stream_dtype=None):
    """x: (B, D); weight: (N, D) as in the PyTorch module; label: (B,).
    Returns (B, N) float32, matching ArcFC.forward.

    w_stream_dtype=jnp.bfloat16 streams the weight from HBM at half the bytes
    (f32 accumulation in-kernel); default keeps the module's f32 weight."""
    B, D = x.shape
    N, D2 = weight.shape
    assert D == D2, "in_features mismatch between x and weight"

    w_stream_dtype = jnp.dtype(w_stream_dtype) if w_stream_dtype is not None \
        else jnp.dtype(weight.dtype)
    # One-time parameter layout prep (do this at weight-load time in a real
    # model): transposed (D, N) so the kernel matmuls need no transpose, plus
    # the optional bf16 cast so HBM bytes are actually halved.
    wt_full = weight.astype(w_stream_dtype).T                  # (D, N)
    label2d = label.reshape(B, 1).astype(jnp.int32)

    w_itemsize = w_stream_dtype.itemsize
    # Per-generation VMEM ceiling: ~48 MiB on v7x (64 MiB physical, leave
    # headroom for compiler scratch), ~96 MiB on v5e/v6e (128 MiB physical).
    vmem_limit = int(0.75 * _vmem_capacity_bytes())

    if tile_n is None:
        tn = _auto_tile_n(B, D, N, w_itemsize, int(0.85 * vmem_limit))
    else:
        tn = int(tile_n)
        if tn >= N:
            tn = N
        else:
            assert tn % 128 == 0, "tile_n must be a multiple of 128 (or >= N)"

    grid = (pl.cdiv(N, tn),)

    kernel = functools.partial(
        _arcfc_kernel,
        s=float(s),
        cos_m=math.cos(m),
        sin_m=math.sin(m),
        th=math.cos(math.pi - m),
        mm=math.sin(math.pi - m) * m,
        easy_margin=easy_margin,
    )

    return pl.pallas_call(
        kernel,
        out_shape=jax.ShapeDtypeStruct((B, N), jnp.float32),
        grid_spec=pltpu.PrefetchScalarGridSpec(
            num_scalar_prefetch=0,
            grid=grid,
            in_specs=[
                pl.BlockSpec((B, D), lambda j: (0, 0)),     # x: resident
                pl.BlockSpec((D, tn), lambda j: (0, j)),    # W^T: streamed over N
                pl.BlockSpec((B, 1), lambda j: (0, 0)),     # label: resident
            ],
            out_specs=pl.BlockSpec((B, tn), lambda j: (0, j)),
        ),
        compiler_params=pltpu.CompilerParams(
            dimension_semantics=("parallel",),              # megacore over N tiles
            vmem_limit_bytes=vmem_limit,
        ),
    )(x, wt_full, label2d)


# ---------------------------------------------------------------------------
# Reference + demo
# ---------------------------------------------------------------------------
def _xavier_uniform(key, out_features, in_features):
    limit = math.sqrt(6.0 / (in_features + out_features))
    return jax.random.uniform(
        key, (out_features, in_features), dtype=jnp.float32,
        minval=-limit, maxval=limit)


def _reference(x, weight, label, s=30.0, m=0.5, easy_margin=False):
    eps = 1e-12
    xn = x / jnp.maximum(jnp.linalg.norm(x, axis=1, keepdims=True), eps)
    wn = weight / jnp.maximum(jnp.linalg.norm(weight, axis=1, keepdims=True), eps)
    cosine = xn @ wn.T
    sine = jnp.sqrt(jnp.maximum(1.0 - cosine ** 2, 0.0))
    phi = cosine * math.cos(m) - sine * math.sin(m)
    if easy_margin:
        phi = jnp.where(cosine > 0, phi, cosine)
    else:
        phi = jnp.where(cosine > math.cos(math.pi - m), phi,
                        cosine - math.sin(math.pi - m) * m)
    one_hot = jax.nn.one_hot(label, cosine.shape[1], dtype=jnp.float32)
    return (one_hot * phi + (1.0 - one_hot) * cosine) * s


if __name__ == "__main__":
    B, in_features, out_features = 8, 32, 512

    key = jax.random.PRNGKey(0)
    kx, kw, kl = jax.random.split(key, 3)

    x = jax.random.normal(kx, (B, in_features), dtype=jnp.float32)
    weight = _xavier_uniform(kw, out_features, in_features)
    label = jax.random.randint(kl, (B,), 0, out_features, dtype=jnp.int32)

    ref = _reference(x, weight, label)

    # f32 weight stream, explicit 4-tile grid.
    out = jax.block_until_ready(
        arcfc_forward(x, weight, label, s=30.0, m=0.5, tile_n=128))
    assert out.shape == (B, out_features)
    assert jnp.allclose(out, ref, atol=1e-4, rtol=1e-4), "tiled f32 mismatch"

    # Auto tile size (per-generation VMEM budget, >= 4 tiles here).
    out_auto = jax.block_until_ready(arcfc_forward(x, weight, label))
    assert jnp.allclose(out_auto, ref, atol=1e-4, rtol=1e-4), "auto-tile mismatch"

    # easy_margin branch.
    out_easy = jax.block_until_ready(
        arcfc_forward(x, weight, label, easy_margin=True, tile_n=128))
    ref_easy = _reference(x, weight, label, easy_margin=True)
    assert jnp.allclose(out_easy, ref_easy, atol=1e-4, rtol=1e-4), "easy_margin mismatch"

    # bf16 weight stream: halves HBM bytes of the dominant stream
    # (f32 accumulation; loose tolerance vs the f32 reference).
    out_bf16 = jax.block_until_ready(
        arcfc_forward(x, weight, label, w_stream_dtype=jnp.bfloat16))
    assert jnp.all(jnp.isfinite(out_bf16))
    assert jnp.allclose(out_bf16, ref, atol=0.5), "bf16 stream grossly off"

    print("KERNEL_OK")
</pallas_src>

<mosaic_0001>
module attributes {stable_mosaic.version = 11 : i64} {
  func.func @_arcfc_kernel(%arg0: i32, %arg1: memref<8x32xf32, #tpu.memory_space<vmem>>, %arg2: memref<32x128xf32, #tpu.memory_space<vmem>>, %arg3: memref<8x1xi32, #tpu.memory_space<vmem>>, %arg4: memref<8x128xf32, #tpu.memory_space<vmem>>) attributes {dimension_semantics = [#tpu.dimension_semantics<parallel>], iteration_bounds = array<i64: 4>, scalar_prefetch = 0 : i64, scratch_operands = 0 : i64, tpu.core_type = #tpu.core_type<tc>, window_params = [{pipeline_mode = #tpu.pipeline_mode<synchronous>, transform_indices = @transform_0, window_bounds = array<i64: 8, 32>}, {transform_indices = @transform_1, window_bounds = array<i64: 32, 128>}, {pipeline_mode = #tpu.pipeline_mode<synchronous>, transform_indices = @transform_2, window_bounds = array<i64: 8, 1>}, {transform_indices = @transform_3, window_bounds = array<i64: 8, 128>}]} {
    %c0 = arith.constant 0 : index
    %c0_0 = arith.constant 0 : index
    %0 = vector.load %arg1[%c0, %c0_0] : memref<8x32xf32, #tpu.memory_space<vmem>>, vector<8x32xf32>
    %1 = arith.mulf %0, %0 : vector<8x32xf32>
    %cst = arith.constant dense<0.000000e+00> : vector<8xf32>
    %2 = vector.multi_reduction <add>, %1, %cst [1] : vector<8x32xf32> to vector<8xf32>
    %3 = vector.shape_cast %2 : vector<8xf32> to vector<8x1xf32>
    %cst_1 = arith.constant 1.000000e-24 : f32
    %4 = vector.broadcast %cst_1 : f32 to vector<8x1xf32>
    %5 = arith.maximumf %3, %4 : vector<8x1xf32>
    %6 = math.rsqrt %5 : vector<8x1xf32>
    %7 = vector.broadcast %6 : vector<8x1xf32> to vector<8x32xf32>
    %8 = arith.mulf %0, %7 : vector<8x32xf32>
    %c0_2 = arith.constant 0 : index
    %c0_3 = arith.constant 0 : index
    %9 = vector.load %arg2[%c0_2, %c0_3] : memref<32x128xf32, #tpu.memory_space<vmem>>, vector<32x128xf32>
    %10 = arith.mulf %9, %9 : vector<32x128xf32>
    %cst_4 = arith.constant 1.000000e+00 : f32
    %11 = vector.broadcast %cst_4 : f32 to vector<1x32xf32>
    %cst_5 = arith.constant dense<0.000000e+00> : vector<1x128xf32>
    %12 = tpu.matmul %11, %10, %cst_5 {dimension_numbers = #tpu.dot_dimension_numbers<[1], [0], [0], [1], [0, 0, 1, 1], [], []>} : vector<1x32xf32>, vector<32x128xf32>, vector<1x128xf32> -> vector<1x128xf32>
    %cst_6 = arith.constant 1.000000e-24 : f32
    %13 = vector.broadcast %cst_6 : f32 to vector<1x128xf32>
    %14 = arith.maximumf %12, %13 : vector<1x128xf32>
    %15 = math.rsqrt %14 : vector<1x128xf32>
    %cst_7 = arith.constant dense<0.000000e+00> : vector<8x128xf32>
    %16 = tpu.matmul %8, %9, %cst_7 {dimension_numbers = #tpu.dot_dimension_numbers<[1], [0], [0], [1], [0, 0, 1, 1], [], []>} : vector<8x32xf32>, vector<32x128xf32>, vector<8x128xf32> -> vector<8x128xf32>
    %17 = vector.broadcast %15 : vector<1x128xf32> to vector<8x128xf32>
    %18 = arith.mulf %16, %17 : vector<8x128xf32>
    %19 = arith.mulf %18, %18 : vector<8x128xf32>
    %cst_8 = arith.constant 1.000000e+00 : f32
    %20 = vector.broadcast %cst_8 : f32 to vector<8x128xf32>
    %21 = arith.subf %20, %19 : vector<8x128xf32>
    %cst_9 = arith.constant 0.000000e+00 : f32
    %22 = vector.broadcast %cst_9 : f32 to vector<8x128xf32>
    %23 = arith.maximumf %21, %22 : vector<8x128xf32>
    %24 = math.sqrt %23 : vector<8x128xf32>
    %cst_10 = arith.constant 0.87758255 : f32
    %25 = vector.broadcast %cst_10 : f32 to vector<8x128xf32>
    %26 = arith.mulf %18, %25 : vector<8x128xf32>
    %cst_11 = arith.constant 0.47942555 : f32
    %27 = vector.broadcast %cst_11 : f32 to vector<8x128xf32>
    %28 = arith.mulf %24, %27 : vector<8x128xf32>
    %29 = arith.subf %26, %28 : vector<8x128xf32>
    %cst_12 = arith.constant -0.87758255 : f32
    %30 = vector.broadcast %cst_12 : f32 to vector<8x128xf32>
    %31 = arith.cmpf ogt, %18, %30 : vector<8x128xf32>
    %cst_13 = arith.constant 0.239712775 : f32
    %32 = vector.broadcast %cst_13 : f32 to vector<8x128xf32>
    %33 = arith.subf %18, %32 : vector<8x128xf32>
    %34 = arith.select %31, %29, %33 : vector<8x128xi1>, vector<8x128xf32>
    %c128_i32 = arith.constant 128 : i32
    %35 = arith.muli %arg0, %c128_i32 : i32
    %36 = tpu.iota {dimensions = array<i32: 1>} : vector<8x128xi32>
    %37 = vector.broadcast %35 : i32 to vector<8x128xi32>
    %38 = arith.addi %37, %36 : vector<8x128xi32>
    %c0_14 = arith.constant 0 : index
    %c0_15 = arith.constant 0 : index
    %39 = vector.load %arg3[%c0_14, %c0_15] : memref<8x1xi32, #tpu.memory_space<vmem>>, vector<8x1xi32>
    %40 = vector.broadcast %39 : vector<8x1xi32> to vector<8x128xi32>
    %41 = arith.cmpi eq, %38, %40 : vector<8x128xi32>
    %42 = arith.select %41, %34, %18 : vector<8x128xi1>, vector<8x128xf32>
    %cst_16 = arith.constant 3.000000e+01 : f32
    %43 = vector.broadcast %cst_16 : f32 to vector<8x128xf32>
    %44 = arith.mulf %42, %43 : vector<8x128xf32>
    %c0_17 = arith.constant 0 : index
    %c0_18 = arith.constant 0 : index
    %45 = vector.load %arg4[%c0_17, %c0_18] : memref<8x128xf32, #tpu.memory_space<vmem>>, vector<8x128xf32>
    tpu.vector_store %arg4[%c0_17, %c0_18], %44 {strides = array<i32>} : memref<8x128xf32, #tpu.memory_space<vmem>>, vector<8x128xf32>,
    return
  }
  func.func @transform_0(%arg0: i32) -> (i32, i32) {
    %c0_i32 = arith.constant 0 : i32
    %c0_i32_0 = arith.constant 0 : i32
    %c0_i32_1 = arith.constant 0 : i32
    return %c0_i32, %c0_i32_0 : i32, i32
  }
  func.func @transform_1(%arg0: i32) -> (i32, i32) {
    %c0_i32 = arith.constant 0 : i32
    %c0_i32_0 = arith.constant 0 : i32
    return %c0_i32, %arg0 : i32, i32
  }
  func.func @transform_2(%arg0: i32) -> (i32, i32) {
    %c0_i32 = arith.constant 0 : i32
    %c0_i32_0 = arith.constant 0 : i32
    %c0_i32_1 = arith.constant 0 : i32
    return %c0_i32, %c0_i32_0 : i32, i32
  }
  func.func @transform_3(%arg0: i32) -> (i32, i32) {
    %c0_i32 = arith.constant 0 : i32
    %c0_i32_0 = arith.constant 0 : i32
    return %c0_i32, %arg0 : i32, i32
  }
}

</mosaic_0001>

<llo_original>
// kernel: tpu_custom_call.1
$region0: #{tpu_custom_call.1}
  #allocation0 [shape = 'u32[]', space=smem, size = 0x4, offset = 0x4, fixed_abs, tag = 'smem constant byte address 0x4 - core index']
  #allocation1 [shape = 'u32[144,128]{1,0:T(1,128)}', space=vmem, size = 0x12000, scoped, tag = 'internal scratch']
  %s0 = inlined_call_operand.vmem [shape: f32[8,32], index: 0, kind: input, shape index: {}]
  %s1 = inlined_call_operand.hbm [shape: f32[32,512], index: 1, kind: input, shape index: {}]
  %s2 = inlined_call_operand.vmem [shape: s32[8,1], index: 2, kind: input, shape index: {}]
  %s3 = inlined_call_operand.hbm [shape: f32[8,512], index: 3, kind: output, shape index: {}]
  %s4 = sld [smem:[#allocation0]]
  $region49: #{tpu_custom_call.1} parent=0
    _
  %s6 = ssub.s32 1, %s4
  %s7 = scalar_select 0, %s6, %s4
  $region1: #{tpu_custom_call.1} parent=0
    #allocation2 [shape = 'u8[32768]{0}', space=vmem, size = 0x8000, scoped, tag = 'input window, operand 1']
    #allocation3 [shape = 's32[2]{0}', space=sflag, size = 0x8, scoped, tag = 'scoped memory for tpu_custom_call.1']
    #allocation4 [shape = 's32[2]{0}', space=sflag, size = 0x8, scoped, tag = 'scoped memory for tpu_custom_call.1']
    #allocation5 [shape = 'u8[8192]{0}', space=vmem, size = 0x2000, scoped, tag = 'output window, operand 0']
    %8 = vsyncpa [#allocation3], 0
    %s9 = scalar_lea.sflag [#allocation3], 1
    %10 = vsyncpa %s9, 0
    %11 = vsyncpa [#allocation4], 0
    %s12 = scalar_lea.sflag [#allocation4], 1
    %13 = vsyncpa %s12, 0
    loop: start=0, step=1, limit=6
    $region2: #{tpu_custom_call.1} parent=1 // loop_pre_header
      _
    $region3: #{tpu_custom_call.1} parent=1 // loop_header
      %s15 = sphi 0, %s19
      %p16 = scmp.ge.s32.totalorder %s15, 6
      %s23 = sphi 0, %s23
      %s25 = sphi 0, %s23
      %s26 = sphi 0, %s25
      %s40 = sphi 0, %s26
      %s46 = sphi 0, %s48
      %s49 = sphi 0, %s46
      %s50 = sphi 0, %s49
      %s66 = sphi 0, %s50
      %s70 = sphi 0, %s70
      %s72 = sphi 0, %s70
      %s73 = sphi 0, %s72
      %s87 = sphi 0, %s73
      %s93 = sphi 0, %s95
      %s96 = sphi 0, %s93
      %s97 = sphi 0, %s96
      %s113 = sphi 0, %s97
    $region4: #{tpu_custom_call.1} parent=1 // loop_header_branch
      %18 = sbr.rel (%p16) target = $region8
    $region5: #{tpu_custom_call.1} parent=1 // loop_body
      %s20 = ssub.s32 %s15, 1
      %s21 = ssub.s32 %s15, 2
      %s22 = sadd.s32 %s15, 1
      %s24 = sadd.s32 %s23, 1
      %p27 = scmp.eq.s32.totalorder %s15, 3
      %p28 = scmp.ne.s32.totalorder %s23, %s25
      %p29 = scmp.eq.s32.totalorder %s15, 0
      %p30 = por %p28, %p29
      %p31 = scmp.ne.s32.totalorder %s23, %s25
      %p32 = scmp.eq.s32.totalorder %s20, 3
      %p33 = por %p31, %p32
      %p34 = scmp.ne.s32.totalorder %s25, %s26
      %p35 = scmp.eq.s32.totalorder %s20, 0
      %p36 = por %p34, %p35
      %p37 = scmp.ne.s32.totalorder %s25, %s26
      %p38 = scmp.eq.s32.totalorder %s21, 3
      %p39 = por %p37, %p38
      %p41 = scmp.ne.s32.totalorder %s26, %s40
      %p42 = scmp.eq.s32.totalorder %s21, 0
      %p43 = por %p41, %p42
      %s44 = ssub.s32 %s15, %s22
      %p45 = scmp.eq.s32.totalorder %s44, 0
      %s47 = sadd.s32 %s46, 1
      %s48 = scalar_select %p45, %s46, %s47
      %p51 = pneg %p45
      %p52 = scmp.eq.s32.totalorder %s15, 3
      %p53 = por %p51, %p52
      %p54 = scmp.ne.s32.totalorder %s46, %s49
      %p55 = scmp.eq.s32.totalorder %s15, 0
      %p56 = por %p54, %p55
      %p57 = scmp.ne.s32.totalorder %s46, %s49
      %p58 = scmp.eq.s32.totalorder %s20, 3
      %p59 = por %p57, %p58
      %p60 = scmp.ne.s32.totalorder %s49, %s50
      %p61 = scmp.eq.s32.totalorder %s20, 0
      %p62 = por %p60, %p61
      %p63 = scmp.ne.s32.totalorder %s49, %s50
      %p64 = scmp.eq.s32.totalorder %s21, 3
      %p65 = por %p63, %p64
      %p67 = scmp.ne.s32.totalorder %s50, %s66
      %p68 = scmp.eq.s32.totalorder %s21, 0
      %p69 = por %p67, %p68
      %s71 = sadd.s32 %s70, 1
      %p74 = scmp.eq.s32.totalorder %s15, 3
      %p75 = scmp.ne.s32.totalorder %s70, %s72
      %p76 = scmp.eq.s32.totalorder %s15, 0
      %p77 = por %p75, %p76
      %p78 = scmp.ne.s32.totalorder %s70, %s72
      %p79 = scmp.eq.s32.totalorder %s20, 3
      %p80 = por %p78, %p79
      %p81 = scmp.ne.s32.totalorder %s72, %s73
      %p82 = scmp.eq.s32.totalorder %s20, 0
      %p83 = por %p81, %p82
      %p84 = scmp.ne.s32.totalorder %s72, %s73
      %p85 = scmp.eq.s32.totalorder %s21, 3
      %p86 = por %p84, %p85
      %p88 = scmp.ne.s32.totalorder %s73, %s87
      %p89 = scmp.eq.s32.totalorder %s21, 0
      %p90 = por %p88, %p89
      %s91 = ssub.s32 %s15, %s22
      %p92 = scmp.eq.s32.totalorder %s91, 0
      %s94 = sadd.s32 %s93, 1
      %s95 = scalar_select %p92, %s93, %s94
      %p98 = pneg %p92
      %p99 = scmp.eq.s32.totalorder %s15, 3
      %p100 = por %p98, %p99
      %p101 = scmp.ne.s32.totalorder %s93, %s96
      %p102 = scmp.eq.s32.totalorder %s15, 0
      %p103 = por %p101, %p102
      %p104 = scmp.ne.s32.totalorder %s93, %s96
      %p105 = scmp.eq.s32.totalorder %s20, 3
      %p106 = por %p104, %p105
      %p107 = scmp.ne.s32.totalorder %s96, %s97
      %p108 = scmp.eq.s32.totalorder %s20, 0
      %p109 = por %p107, %p108
      %p110 = scmp.ne.s32.totalorder %s96, %s97
      %p111 = scmp.eq.s32.totalorder %s21, 3
      %p112 = por %p110, %p111
      %p114 = scmp.ne.s32.totalorder %s97, %s113
      %p115 = scmp.eq.s32.totalorder %s21, 0
      %p116 = por %p114, %p115
      %p117 = scmp.le.s32.totalorder 1, %s15
      %p118 = scmp.lt.s32.totalorder %s15, 5
      %p119 = pnand %p117, %p118
      %p120 = pneg %p119
      // Predicated region
      $region9: #{tpu_custom_call.1} parent=5 // pred_check
        _
      $region10: #{tpu_custom_call.1} parent=5 // pred_check_branch
        %122 = sbr.rel (%p119) target = $region12
      $region11: #{tpu_custom_call.1} parent=5 // pred_region
        %s123 = ssub.s32 %s15, 1
        // Predicated region
        $region13: #{tpu_custom_call.1} parent=11 // pred_check
          %p124 = pneg %p36
        $region14: #{tpu_custom_call.1} parent=11 // pred_check_branch
          %126 = sbr.rel (%p124) target = $region16
        $region15: #{tpu_custom_call.1} parent=11 // pred_region
          _
        $region16: #{tpu_custom_call.1} parent=11 // pred_fallthru
          _
        // Predicated region
        $region17: #{tpu_custom_call.1} parent=11 // pred_check
          %p127 = pneg %p83
        $region18: #{tpu_custom_call.1} parent=11 // pred_check_branch
          %129 = sbr.rel (%p127) target = $region20
        $region19: #{tpu_custom_call.1} parent=11 // pred_region
          _
        $region20: #{tpu_custom_call.1} parent=11 // pred_fallthru
          _
      $region12: #{tpu_custom_call.1} parent=5 // pred_fallthru
        _
      %p130 = scmp.lt.s32.totalorder %s15, 4
      // Predicated region
      $region21: #{tpu_custom_call.1} parent=5 // pred_check
        %p131 = pneg %p130
      $region22: #{tpu_custom_call.1} parent=5 // pred_check_branch
        %133 = sbr.rel (%p131) target = $region24
      $region23: #{tpu_custom_call.1} parent=5 // pred_region
        // Predicated region
        $region25: #{tpu_custom_call.1} parent=23 // pred_check
          %p134 = pneg %p56
        $region26: #{tpu_custom_call.1} parent=23 // pred_check_branch
          %136 = sbr.rel (%p134) target = $region28
        $region27: #{tpu_custom_call.1} parent=23 // pred_region
          %s137 = sand.u32 %s46, 1
          %s138 = scalar_lea.sflag [#allocation3], %s137
          %s139 = sand.u32 %s46, 1
          %s140 = smul.addr %s139, 32
          %s141 = scalar_lea.vmem [#allocation2], %s140
          %s143 = ssub.s32 512, 512
          %144 = vsyncadd %s138, %s143
          %s145 = smul.addr %s15, 128
          %s146 = scalar_lea.hbm %s1, %s145
          %s147 = sshll.u32 %s141, 4
          %s148 = int_to_ptr.vmem [resolvable:$true] %s147
          %153 = dma.hbm_to_vmem [thread:$0]  %s146, 512, %s148, %s138, 512, 128, 8
        $region28: #{tpu_custom_call.1} parent=23 // pred_fallthru
          _
      $region24: #{tpu_custom_call.1} parent=5 // pred_fallthru
        _
      %p154 = scmp.le.s32.totalorder 1, %s15
      %p155 = scmp.lt.s32.totalorder %s15, 5
      %p156 = pnand %p154, %p155
      %p157 = pneg %p156
      // Predicated region
      $region29: #{tpu_custom_call.1} parent=5 // pred_check
        _
      $region30: #{tpu_custom_call.1} parent=5 // pred_check_branch
        %159 = sbr.rel (%p156) target = $region32
      $region31: #{tpu_custom_call.1} parent=5 // pred_region
        %s160 = ssub.s32 %s15, 1
        %s161 = sand.u32 %s49, 1
        %s162 = scalar_lea.sflag [#allocation3], %s161
        %s163 = sand.u32 %s49, 1
        %s164 = smul.addr %s163, 32
        %s165 = scalar_lea.vmem [#allocation2], %s164
        // Predicated region
        $region33: #{tpu_custom_call.1} parent=31 // pred_check
          %p166 = pneg %p62
        $region34: #{tpu_custom_call.1} parent=31 // pred_check_branch
          %168 = sbr.rel (%p166) target = $region36
        $region35: #{tpu_custom_call.1} parent=31 // pred_region
          %169 = dma.done %s162, 512
        $region36: #{tpu_custom_call.1} parent=31 // pred_fallthru
          _
        %p170 = pneg %p36
        %p171 = pneg %p33
        %s172 = sand.u32 %s49, 1
        %s173 = scalar_lea.sflag [#allocation3], %s172
        %s174 = sand.u32 %s49, 1
        %s175 = smul.addr %s174, 32
        %s176 = scalar_lea.vmem [#allocation2], %s175
        %p177 = pneg %p62
        %p178 = pneg %p59
        %p179 = pneg %p83
        %p180 = pneg %p80
        %p181 = pneg %p109
        %p182 = pneg %p106
        %s183 = sand.u32 %s96, 1
        %s184 = scalar_lea.sflag [#allocation4], %s183
        %s185 = sand.u32 %s96, 1
        %s186 = smul.addr %s185, 8
        %s187 = scalar_lea.vmem [#allocation5], %s186
        %v188 = vld [vmem:[%s0] sm:$0xff]
        %v189 = vmul.f32 %v188, %v188
        %vm190 = vcmask 261120
        %v191 = vsel %vm190, %v189, 0.0
        %192 = vadd.xlane.f32.xlu0 %v191
        %v193 = vpop.xlane.xlu0 %192
        %v194 = vmax.f32 %v193, 1e-24
        %v195 = vrsqrt.pop %v194
        %v196 = vmul.f32 %v188, %v195
        %v197 = vld [vmem:[%s165] sm:$0xff]
        %v198 = vld [vmem:[%s165 + $0x8] sm:$0xff]
        %v199 = vld [vmem:[%s165 + $0x10] sm:$0xff]
        %v200 = vld [vmem:[%s165 + $0x18] sm:$0xff]
        %v201 = vmul.f32 %v197, %v197
        %v202 = vmul.f32 %v198, %v198
        %v203 = vmul.f32 %v199, %v199
        %v204 = vmul.f32 %v200, %v200
        %v206 = vsel %vm190, 1.0, 0
        %208 = vmatprep.subr.mxu0 0.0
        %209 = vmatpush1.msra.mxu0 %v201
        %210 = vmatprep.subr.mxu0 0.0
        %211 = vmatpush1.msra.mxu0 %v202
        %212 = vmatprep.subr.mxu0 0.0
        %213 = vmatpush1.msra.mxu0 %v203
        %214 = vmatprep.subr.mxu0 0.0
        %215 = vmatpush1.msra.mxu0 %v204
        %216 = vmatprep.subr.mxu0 0.0
        %217 = vmatpush1.msra.mxu0 0.0
        %218 = vmatprep.subr.mxu0 0.0
        %219 = vmatpush1.msra.mxu0 0.0
        %220 = vmatprep.subr.mxu0 0.0
        %221 = vmatpush1.msra.mxu0 0.0
        %222 = vmatprep.subr.mxu0 0.0
        %223 = vmatpush1.msra.mxu0 0.0
        %224 = vmatprep.subr.mxu0 0.0
        %225 = vmatpush1.msra.mxu0 0.0
        %226 = vmatprep.subr.mxu0 0.0
        %227 = vmatpush1.msra.mxu0 0.0
        %228 = vmatprep.subr.mxu0 0.0
        %229 = vmatpush1.msra.mxu0 0.0
        %230 = vmatprep.subr.mxu0 0.0
        %231 = vmatpush1.msra.mxu0 0.0
        %232 = vmatprep.subr.mxu0 0.0
        %233 = vmatpush1.msra.mxu0 0.0
        %234 = vmatprep.subr.mxu0 0.0
        %235 = vmatpush1.msra.mxu0 0.0
        %236 = vmatprep.subr.mxu0 0.0
        %237 = vmatpush1.msra.mxu0 0.0
        %238 = vmatprep.subr.mxu0 0.0
        %239 = vmatpush1.msra.mxu0 0.0
        %240 = vmatprep.subr.mxu0 0.0
        %241 = vmatpush1.msra.mxu0 0.0
        %242 = vmatprep.subr.mxu0 0.0
        %243 = vmatpush1.msra.mxu0 0.0
        %244 = vmatprep.subr.mxu0 0.0
        %245 = vmatpush1.msra.mxu0 0.0
        %246 = vmatprep.subr.mxu0 0.0
        %247 = vmatpush1.msra.mxu0 0.0
        %248 = vmatprep.subr.mxu0 0.0
        %249 = vmatpush1.msra.mxu0 0.0
        %250 = vmatprep.subr.mxu0 0.0
        %251 = vmatpush1.msra.mxu0 0.0
        %252 = vmatprep.subr.mxu0 0.0
        %253 = vmatpush1.msra.mxu0 0.0
        %254 = vmatprep.subr.mxu0 0.0
        %255 = vmatpush1.msra.mxu0 0.0
        %256 = vmatprep.subr.mxu0 0.0
        %257 = vmatpush1.msra.mxu0 0.0
        %258 = vmatprep.subr.mxu0 0.0
        %259 = vmatpush1.msra.mxu0 0.0
        %260 = vmatprep.subr.mxu0 0.0
        %261 = vmatpush1.msra.mxu0 0.0
        %262 = vmatprep.subr.mxu0 0.0
        %263 = vmatpush1.msra.mxu0 0.0
        %264 = vmatprep.subr.mxu0 0.0
        %265 = vmatpush1.msra.mxu0 0.0
        %266 = vmatprep.subr.mxu0 0.0
        %267 = vmatpush1.msra.mxu0 0.0
        %268 = vmatprep.subr.mxu0 0.0
        %269 = vmatpush1.msra.mxu0 0.0
        %270 = vmatprep.subr.mxu0 0.0
        %271 = vmatpush1.msra.mxu0 0.0
        %272 = vmatprep.mubr.f32.mxu0 0.0
        %273 = vmatmul.mubr.f32.gmra.mrb[0].mxu0 %v206
        %v274 = vpop.f32.mrb[0].mxu0
        %v275 = vadd.f32 0.0, %v274
        %v276 = vpop.f32.mrb[0].mxu0
        %277 = vdwg.mxu0
        %v278 = vmax.f32 %v275, 1e-24
        %v279 = vrsqrt.pop %v278
        %v281 = vsel %vm190, %v196, 0
        %283 = vmatprep.subr.mxu0 0.0
        %284 = vmatpush1.msra.mxu0 %v197
        %285 = vmatprep.subr.mxu0 0.0
        %286 = vmatpush1.msra.mxu0 %v198
        %287 = vmatprep.subr.mxu0 0.0
        %288 = vmatpush1.msra.mxu0 %v199
        %289 = vmatprep.subr.mxu0 0.0
        %290 = vmatpush1.msra.mxu0 %v200
        %291 = vmatprep.subr.mxu0 0.0
        %292 = vmatpush1.msra.mxu0 0.0
        %293 = vmatprep.subr.mxu0 0.0
        %294 = vmatpush1.msra.mxu0 0.0
        %295 = vmatprep.subr.mxu0 0.0
        %296 = vmatpush1.msra.mxu0 0.0
        %297 = vmatprep.subr.mxu0 0.0
        %298 = vmatpush1.msra.mxu0 0.0
        %299 = vmatprep.subr.mxu0 0.0
        %300 = vmatpush1.msra.mxu0 0.0
        %301 = vmatprep.subr.mxu0 0.0
        %302 = vmatpush1.msra.mxu0 0.0
        %303 = vmatprep.subr.mxu0 0.0
        %304 = vmatpush1.msra.mxu0 0.0
        %305 = vmatprep.subr.mxu0 0.0
        %306 = vmatpush1.msra.mxu0 0.0
        %307 = vmatprep.subr.mxu0 0.0
        %308 = vmatpush1.msra.mxu0 0.0
        %309 = vmatprep.subr.mxu0 0.0
        %310 = vmatpush1.msra.mxu0 0.0
        %311 = vmatprep.subr.mxu0 0.0
        %312 = vmatpush1.msra.mxu0 0.0
        %313 = vmatprep.subr.mxu0 0.0
        %314 = vmatpush1.msra.mxu0 0.0
        %315 = vmatprep.subr.mxu0 0.0
        %316 = vmatpush1.msra.mxu0 0.0
        %317 = vmatprep.subr.mxu0 0.0
        %318 = vmatpush1.msra.mxu0 0.0
        %319 = vmatprep.subr.mxu0 0.0
        %320 = vmatpush1.msra.mxu0 0.0
        %321 = vmatprep.subr.mxu0 0.0
        %322 = vmatpush1.msra.mxu0 0.0
        %323 = vmatprep.subr.mxu0 0.0
        %324 = vmatpush1.msra.mxu0 0.0
        %325 = vmatprep.subr.mxu0 0.0
        %326 = vmatpush1.msra.mxu0 0.0
        %327 = vmatprep.subr.mxu0 0.0
        %328 = vmatpush1.msra.mxu0 0.0
        %329 = vmatprep.subr.mxu0 0.0
        %330 = vmatpush1.msra.mxu0 0.0
        %331 = vmatprep.subr.mxu0 0.0
        %332 = vmatpush1.msra.mxu0 0.0
        %333 = vmatprep.subr.mxu0 0.0
        %334 = vmatpush1.msra.mxu0 0.0
        %335 = vmatprep.subr.mxu0 0.0
        %336 = vmatpush1.msra.mxu0 0.0
        %337 = vmatprep.subr.mxu0 0.0
        %338 = vmatpush1.msra.mxu0 0.0
        %339 = vmatprep.subr.mxu0 0.0
        %340 = vmatpush1.msra.mxu0 0.0
        %341 = vmatprep.subr.mxu0 0.0
        %342 = vmatpush1.msra.mxu0 0.0
        %343 = vmatprep.subr.mxu0 0.0
        %344 = vmatpush1.msra.mxu0 0.0
        %345 = vmatprep.subr.mxu0 0.0
        %346 = vmatpush1.msra.mxu0 0.0
        %347 = vmatprep.mubr.f32.mxu0 0.0
        %348 = vmatmul.mubr.f32.gmra.mrb[0].mxu0 %v281
        %v349 = vpop.f32.mrb[0].mxu0
        %v350 = vadd.f32 0.0, %v349
        %v351 = vpop.f32.mrb[0].mxu0
        %352 = vdwg.mxu0
        %v353 = vlaneseq
        %v354 = vshrl.u32 %v353, 7
        %v355 = vsub.s32 0, %v354
        %v356 = vrot.slane %v279, %v355
        %v357 = vmul.f32 %v350, %v356
        %v358 = vmul.f32 %v357, %v357
        %v359 = vsub.f32 1.0, %v358
        %v360 = vmax.f32 %v359, 0.0
        %v361 = vrsqrt.pop %v360
        %v362 = vmul.f32 %v360, %v361
        %vm363 = vcmp.eq.f32.partialorder %v360, inf
        %v364 = vsel %vm363, %v360, %v362
        %vm365 = vcmp.eq.f32.partialorder %v360, 0.0
        %v366 = vand.u32 %v360, 2147483648
        %v367 = vsel %vm365, %v366, %v364
        %v368 = vmul.f32 %v357, 0.87758255
        %v369 = vmul.f32 %v367, 0.47942555
        %v370 = vsub.f32 %v368, %v369
        %vm371 = vcmp.gt.f32.partialorder %v357, -0.87758255
        %v372 = vsub.f32 %v357, 0.23971277
        %v373 = vsel %vm371, %v370, %v372
        %s374 = smul.u32 %s20, 128
        %v375 = vlaneseq
        %v376 = vand.u32 %v375, 127
        %v377 = vstv %s374
        %v378 = vadd.s32 %v377, %v376
        %v379 = vld [vmem:[%s2] sm:$0xff]
        %380 = vset.pattern.permute.xlu0 0
        %381 = vperm.xlu0 %380, %v379
        %v382 = vpop.permute.xlu0 %381
        %vm383 = vcmp.eq.s32.totalorder %v378, %v382
        %v384 = vsel %vm383, %v373, %v357
        %v385 = vmul.f32 %v384, 30.0
        %386 = vst [vmem:[%s187] sm:$0xff] %v385
        %s387 = sand.u32 %s96, 1
        %s388 = scalar_lea.sflag [#allocation4], %s387
        %s389 = sand.u32 %s96, 1
        %s390 = smul.addr %s389, 8
        %s391 = scalar_lea.vmem [#allocation5], %s390
        // Predicated region
        $region37: #{tpu_custom_call.1} parent=31 // pred_check
          %p392 = pneg %p106
        $region38: #{tpu_custom_call.1} parent=31 // pred_check_branch
          %394 = sbr.rel (%p392) target = $region40
        $region39: #{tpu_custom_call.1} parent=31 // pred_region
          %s396 = ssub.s32 128, 128
          %397 = vsyncadd %s388, %s396
          %s398 = smul.addr %s20, 128
          %s399 = scalar_lea.hbm %s3, %s398
          %s401 = sshll.u32 %s391, 4
          %s402 = int_to_ptr.vmem [resolvable:$true] %s401
          %404 = dma.vmem_to_hbm [thread:$0]  %s402, 128, %s399, %s388
        $region40: #{tpu_custom_call.1} parent=31 // pred_fallthru
          _
      $region32: #{tpu_custom_call.1} parent=5 // pred_fallthru
        _
      %p405 = scmp.le.s32.totalorder 2, %s15
      // Predicated region
      $region41: #{tpu_custom_call.1} parent=5 // pred_check
        %p406 = pneg %p405
      $region42: #{tpu_custom_call.1} parent=5 // pred_check_branch
        %408 = sbr.rel (%p406) target = $region44
      $region43: #{tpu_custom_call.1} parent=5 // pred_region
        %s409 = ssub.s32 %s15, 2
        // Predicated region
        $region45: #{tpu_custom_call.1} parent=43 // pred_check
          %p410 = pneg %p112
        $region46: #{tpu_custom_call.1} parent=43 // pred_check_branch
          %412 = sbr.rel (%p410) target = $region48
        $region47: #{tpu_custom_call.1} parent=43 // pred_region
          %s413 = sand.u32 %s97, 1
          %s414 = scalar_lea.sflag [#allocation4], %s413
          %s415 = sand.u32 %s97, 1
          %s416 = smul.addr %s415, 8
          %s417 = scalar_lea.vmem [#allocation5], %s416
          %418 = dma.done %s414, 128
        $region48: #{tpu_custom_call.1} parent=43 // pred_fallthru
          _
      $region44: #{tpu_custom_call.1} parent=5 // pred_fallthru
        _
    $region6: #{tpu_custom_call.1} parent=1 // loop_footer
      %s19 = sadd.s32 1, %s15
    $region7: #{tpu_custom_call.1} parent=1 // loop_footer_branch
      %14 = sbr.rel target = $region3
    $region8: #{tpu_custom_call.1} parent=1 // loop_exit
      _
    %419 = vsyncpa [#allocation3], 1
    %s420 = scalar_lea.sflag [#allocation3], 1
    %421 = vsyncpa %s420, 1
    %422 = vsyncpa [#allocation4], 1
    %s423 = scalar_lea.sflag [#allocation4], 1
    %424 = vsyncpa %s423, 1

</llo_original>
